<compile_context>
chip_gen: v7x
topology: tpu7x:2x2x1
jax: 0.10.0
libtpu: 0.0.40
codegen_flags: <defaults>
</compile_context>

<pallas_src>
import functools

import jax
import jax.numpy as jnp
from jax import lax
from jax.experimental import pallas as pl
from jax.experimental.pallas import tpu as pltpu

GAMMA = 1.5            # hardcoded as z*sqrt(z) in-kernel
ALPHA = 0.25
LANES = 128
ACC_ROWS = 8           # one f32 vreg of sublanes
MAX_TILE_ROWS = 4096   # 4096*128*4B = 2 MiB per input per pipeline buffer
N_CHUNKS = 2           # leading "parallel" axis (2 TensorCores on v7x)


def _focal_loss_kernel(pred_ref, true_ref, out_ref, acc_ref, *,
                       rows, tile_rows, steps_per_chunk,
                       needs_mask, first_masked_tile):
    c = pl.program_id(0)   # parallel chunk (sharded across TCs on v7x)
    i = pl.program_id(1)   # sequential step within the chunk

    @pl.when(i == 0)
    def _():
        acc_ref[...] = jnp.zeros_like(acc_ref)

    x = pred_ref[...].astype(jnp.float32)
    t = true_ref[...].astype(jnp.float32)

    # Shared transcendental: e = exp(-|x|) feeds both the BCE log-term and the
    # sigmoid, so only one EUP exp per element.
    e = jnp.exp(-jnp.abs(x))                           # EUP: exp
    bce = jnp.maximum(x, 0.0) - x * t + jnp.log1p(e)   # BCE-with-logits, 'none'

    # sigmoid(x) from the shared e. Approximate reciprocal + Newton-Raphson on
    # the VPU keeps the divide refinement off the (single-slot) EUP.
    d = 1.0 + e
    r = pl.reciprocal(d, approx=True)
    r = r * (2.0 - d * r)                              # NR step 1
    r = r * (2.0 - d * r)                              # NR step 2 (safety margin)
    p = jnp.where(x >= 0.0, r, e * r)

    # z = 1 - p_t = t + p - 2*t*p   (exact for targets in [0,1], no clamp)
    z = t + p - 2.0 * t * p
    af = (1.0 - ALPHA) + (2.0 * ALPHA - 1.0) * t       # = 0.75 - 0.5*t
    mf = z * jnp.sqrt(z)                               # z**GAMMA, GAMMA=1.5
    loss = bce * af * mf

    def fold(v):
        # Fold the tile into a one-vreg accumulator with pure VPU adds.
        return v.reshape(tile_rows // ACC_ROWS, ACC_ROWS, LANES).sum(axis=0)

    if needs_mask:
        b = c * steps_per_chunk + i                    # global tile index (unclamped)

        @pl.when(b < first_masked_tile)
        def _():
            acc_ref[...] += fold(loss)

        @pl.when(b >= first_masked_tile)
        def _():
            # Only the ragged last tile and clamped duplicate tiles pay for
            # the iota + compare + select.
            row = lax.broadcasted_iota(jnp.int32, (tile_rows, LANES), 0)
            global_row = b * tile_rows + row
            acc_ref[...] += fold(jnp.where(global_row < rows, loss, 0.0))
    else:
        acc_ref[...] += fold(loss)

    # Emit this chunk's lane-dense partial sum once, on its last step.
    @pl.when(i == pl.num_programs(1) - 1)
    def _():
        out_ref[0] = acc_ref[...]


def focal_loss(pred, true):
    """FocalLoss(BCEWithLogitsLoss(reduction='mean')) forward.

    Accepts any shape (NCHW ok) and any float dtype (bf16 inputs halve HBM
    traffic on v5e/v6e; math is done in f32 inside the kernel).
    """
    assert pred.shape == true.shape
    total = pred.size

    flat_p = pred.reshape(-1)
    flat_t = true.reshape(-1)

    rows = max(pl.cdiv(total, LANES), ACC_ROWS)
    padded_len = rows * LANES
    if padded_len != total:
        # Rare path (size not a multiple of 128, or < 1024 elems): minimal pad
        # with loss-neutral values (bce ~ exp(-30), mf ~ 0 => loss ~ 1e-33),
        # so padded elements need no in-kernel masking and are far below f32
        # rounding in the mean (we still divide by the true element count).
        pad = padded_len - total
        flat_p = jnp.pad(flat_p, (0, pad), constant_values=30.0)
        flat_t = jnp.pad(flat_t, (0, pad), constant_values=1.0)
    pred2d = flat_p.reshape(rows, LANES)   # row-major reshape: no extra HBM pass
    true2d = flat_t.reshape(rows, LANES)

    # Largest lane-dense tile that is a multiple of 8 sublanes and <= rows.
    tile_rows = min(MAX_TILE_ROWS, (rows // ACC_ROWS) * ACC_ROWS)
    n_tiles = pl.cdiv(rows, tile_rows)
    n_chunks = N_CHUNKS if n_tiles >= N_CHUNKS else 1
    steps_per_chunk = pl.cdiv(n_tiles, n_chunks)

    has_partial_tile = (rows % tile_rows) != 0
    first_masked_tile = (n_tiles - 1) if has_partial_tile else n_tiles
    # Masking is needed only for a ragged last tile and/or clamped duplicate
    # tiles introduced by the even chunk split; skipped at trace time otherwise.
    needs_mask = first_masked_tile < n_chunks * steps_per_chunk

    last_tile = n_tiles - 1

    def in_idx(c, i):
        # Clamp so duplicated tail steps re-read the last real tile; their
        # contribution is fully masked in-kernel.
        return (jnp.minimum(c * steps_per_chunk + i, last_tile), 0)

    kernel = functools.partial(
        _focal_loss_kernel,
        rows=rows, tile_rows=tile_rows, steps_per_chunk=steps_per_chunk,
        needs_mask=needs_mask, first_masked_tile=first_masked_tile)

    bytes_in = (pred2d.size * pred2d.dtype.itemsize
                + true2d.size * true2d.dtype.itemsize)
    cost = pl.CostEstimate(
        flops=16 * total,
        transcendentals=3 * total,
        bytes_accessed=bytes_in + n_chunks * ACC_ROWS * LANES * 4)

    partials = pl.pallas_call(
        kernel,
        out_shape=jax.ShapeDtypeStruct((n_chunks, ACC_ROWS, LANES), jnp.float32),
        grid_spec=pltpu.PrefetchScalarGridSpec(
            num_scalar_prefetch=0,
            grid=(n_chunks, steps_per_chunk),
            in_specs=[
                pl.BlockSpec((tile_rows, LANES), in_idx),
                pl.BlockSpec((tile_rows, LANES), in_idx),
            ],
            out_specs=pl.BlockSpec((1, ACC_ROWS, LANES), lambda c, i: (c, 0, 0)),
            scratch_shapes=[pltpu.VMEM((ACC_ROWS, LANES), jnp.float32)],
        ),
        compiler_params=pltpu.CompilerParams(
            dimension_semantics=("parallel", "arbitrary"),
            vmem_limit_bytes=48 * 1024 * 1024,   # headroom; < v7x 64 MiB physical
        ),
        cost_estimate=cost,
    )(pred2d, true2d)

    # Tiny final reduction of the per-chunk partials + mean divide.
    return partials.sum() / jnp.float32(total)


def _focal_loss_ref(pred, true):
    x = pred.astype(jnp.float32)
    t = true.astype(jnp.float32)
    bce = jnp.maximum(x, 0.0) - x * t + jnp.log1p(jnp.exp(-jnp.abs(x)))
    p = jax.nn.sigmoid(x)
    p_t = t * p + (1.0 - t) * (1.0 - p)
    af = t * ALPHA + (1.0 - t) * (1.0 - ALPHA)
    mf = jnp.power(1.0 - p_t, GAMMA)
    return jnp.mean(bce * af * mf)


if __name__ == "__main__":
    key = jax.random.PRNGKey(0)
    k1, k2, k3, k4 = jax.random.split(key, 4)

    # NCHW-like shapes consistent with YOLO objectness/class logits.
    pred = jax.random.normal(k1, (2, 4, 16, 16), dtype=jnp.float32)
    true = (jax.random.uniform(k2, (2, 4, 16, 16)) > 0.7).astype(jnp.float32)

    out = focal_loss(pred, true)
    jax.block_until_ready(out)
    ref = _focal_loss_ref(pred, true)
    assert jnp.allclose(out, ref, rtol=1e-5, atol=1e-6), (out, ref)

    # Non-128-divisible size: exercises neutral pad + ragged-tile mask + the
    # 2-chunk parallel split (one partial tile per chunk path).
    pred2 = jax.random.normal(k3, (3, 5, 7, 11), dtype=jnp.float32)
    true2 = (jax.random.uniform(k4, (3, 5, 7, 11)) > 0.5).astype(jnp.float32)
    out2 = focal_loss(pred2, true2)
    jax.block_until_ready(out2)
    ref2 = _focal_loss_ref(pred2, true2)
    assert jnp.allclose(out2, ref2, rtol=1e-5, atol=1e-6), (out2, ref2)

    print("KERNEL_OK")
</pallas_src>

<mosaic_0001>
module attributes {stable_mosaic.version = 11 : i64} {
  func.func @_focal_loss_kernel(%arg0: i32, %arg1: i32, %arg2: memref<16x128xf32, #tpu.memory_space<vmem>>, %arg3: memref<16x128xf32, #tpu.memory_space<vmem>>, %arg4: memref<1x8x128xf32, #tpu.memory_space<vmem>>, %arg5: memref<8x128xf32, #tpu.memory_space<vmem>>) attributes {dimension_semantics = [#tpu.dimension_semantics<parallel>, #tpu.dimension_semantics<arbitrary>], iteration_bounds = array<i64: 1, 1>, scalar_prefetch = 0 : i64, scratch_operands = 1 : i64, tpu.core_type = #tpu.core_type<tc>, window_params = [{transform_indices = @transform_0, window_bounds = array<i64: 16, 128>}, {transform_indices = @transform_1, window_bounds = array<i64: 16, 128>}, {transform_indices = @transform_2, window_bounds = array<i64: 1, 8, 128>}]} {
    %c0_i32 = arith.constant 0 : i32
    %0 = arith.cmpi eq, %arg1, %c0_i32 : i32
    %1 = arith.extui %0 : i1 to i32
    %c0_i32_0 = arith.constant 0 : i32
    %2 = arith.cmpi ne, %1, %c0_i32_0 : i32
    scf.if %2 {
      %cst_19 = arith.constant 0.000000e+00 : f32
      %51 = vector.broadcast %cst_19 : f32 to vector<8x128xf32>
      %c0_20 = arith.constant 0 : index
      %c0_21 = arith.constant 0 : index
      %52 = vector.load %arg5[%c0_20, %c0_21] : memref<8x128xf32, #tpu.memory_space<vmem>>, vector<8x128xf32>
      tpu.vector_store %arg5[%c0_20, %c0_21], %51 {strides = array<i32>} : memref<8x128xf32, #tpu.memory_space<vmem>>, vector<8x128xf32>,
    } else {
    }
    %c0 = arith.constant 0 : index
    %c0_1 = arith.constant 0 : index
    %3 = vector.load %arg2[%c0, %c0_1] : memref<16x128xf32, #tpu.memory_space<vmem>>, vector<16x128xf32>
    %c0_2 = arith.constant 0 : index
    %c0_3 = arith.constant 0 : index
    %4 = vector.load %arg3[%c0_2, %c0_3] : memref<16x128xf32, #tpu.memory_space<vmem>>, vector<16x128xf32>
    %5 = math.absf %3 : vector<16x128xf32>
    %cst = arith.constant 0.000000e+00 : f32
    %6 = vector.broadcast %cst : f32 to vector<16x128xf32>
    %7 = arith.subf %6, %5 : vector<16x128xf32>
    %8 = math.exp %7 : vector<16x128xf32>
    %cst_4 = arith.constant 0.000000e+00 : f32
    %9 = vector.broadcast %cst_4 : f32 to vector<16x128xf32>
    %10 = arith.maximumf %3, %9 : vector<16x128xf32>
    %11 = arith.mulf %3, %4 : vector<16x128xf32>
    %12 = arith.subf %10, %11 : vector<16x128xf32>
    %13 = math.log1p %8 : vector<16x128xf32>
    %14 = arith.addf %12, %13 : vector<16x128xf32>
    %cst_5 = arith.constant 1.000000e+00 : f32
    %15 = vector.broadcast %cst_5 : f32 to vector<16x128xf32>
    %16 = arith.addf %15, %8 : vector<16x128xf32>
    %17 = tpu.reciprocal %16 {approx = true} : vector<16x128xf32> -> vector<16x128xf32>
    %18 = arith.mulf %16, %17 : vector<16x128xf32>
    %cst_6 = arith.constant 2.000000e+00 : f32
    %19 = vector.broadcast %cst_6 : f32 to vector<16x128xf32>
    %20 = arith.subf %19, %18 : vector<16x128xf32>
    %21 = arith.mulf %17, %20 : vector<16x128xf32>
    %22 = arith.mulf %16, %21 : vector<16x128xf32>
    %cst_7 = arith.constant 2.000000e+00 : f32
    %23 = vector.broadcast %cst_7 : f32 to vector<16x128xf32>
    %24 = arith.subf %23, %22 : vector<16x128xf32>
    %25 = arith.mulf %21, %24 : vector<16x128xf32>
    %cst_8 = arith.constant 0.000000e+00 : f32
    %26 = vector.broadcast %cst_8 : f32 to vector<16x128xf32>
    %27 = arith.cmpf oge, %3, %26 : vector<16x128xf32>
    %28 = arith.mulf %8, %25 : vector<16x128xf32>
    %29 = arith.select %27, %25, %28 : vector<16x128xi1>, vector<16x128xf32>
    %30 = arith.addf %4, %29 : vector<16x128xf32>
    %cst_9 = arith.constant 2.000000e+00 : f32
    %31 = vector.broadcast %cst_9 : f32 to vector<16x128xf32>
    %32 = arith.mulf %31, %4 : vector<16x128xf32>
    %33 = arith.mulf %32, %29 : vector<16x128xf32>
    %34 = arith.subf %30, %33 : vector<16x128xf32>
    %cst_10 = arith.constant -5.000000e-01 : f32
    %35 = vector.broadcast %cst_10 : f32 to vector<16x128xf32>
    %36 = arith.mulf %35, %4 : vector<16x128xf32>
    %cst_11 = arith.constant 7.500000e-01 : f32
    %37 = vector.broadcast %cst_11 : f32 to vector<16x128xf32>
    %38 = arith.addf %37, %36 : vector<16x128xf32>
    %39 = math.sqrt %34 : vector<16x128xf32>
    %40 = arith.mulf %34, %39 : vector<16x128xf32>
    %41 = arith.mulf %14, %38 : vector<16x128xf32>
    %42 = arith.mulf %41, %40 : vector<16x128xf32>
    %c0_12 = arith.constant 0 : index
    %c0_13 = arith.constant 0 : index
    %43 = vector.load %arg5[%c0_12, %c0_13] : memref<8x128xf32, #tpu.memory_space<vmem>>, vector<8x128xf32>
    %44 = vector.shape_cast %42 : vector<16x128xf32> to vector<2x8x128xf32>
    %cst_14 = arith.constant dense<0.000000e+00> : vector<8x128xf32>
    %45 = vector.multi_reduction <add>, %44, %cst_14 [0] : vector<2x8x128xf32> to vector<8x128xf32>
    %46 = arith.addf %43, %45 : vector<8x128xf32>
    %c0_15 = arith.constant 0 : index
    %c0_16 = arith.constant 0 : index
    %47 = vector.load %arg5[%c0_15, %c0_16] : memref<8x128xf32, #tpu.memory_space<vmem>>, vector<8x128xf32>
    tpu.vector_store %arg5[%c0_15, %c0_16], %46 {strides = array<i32>} : memref<8x128xf32, #tpu.memory_space<vmem>>, vector<8x128xf32>,
    %c0_i32_17 = arith.constant 0 : i32
    %48 = arith.cmpi eq, %arg1, %c0_i32_17 : i32
    %49 = arith.extui %48 : i1 to i32
    %c0_i32_18 = arith.constant 0 : i32
    %50 = arith.cmpi ne, %49, %c0_i32_18 : i32
    scf.if %50 {
      %c0_19 = arith.constant 0 : index
      %c0_20 = arith.constant 0 : index
      %51 = vector.load %arg5[%c0_19, %c0_20] : memref<8x128xf32, #tpu.memory_space<vmem>>, vector<8x128xf32>
      %c0_21 = arith.constant 0 : index
      %c0_22 = arith.constant 0 : index
      %c0_23 = arith.constant 0 : index
      %52 = vector.load %arg4[%c0_21, %c0_22, %c0_23] : memref<1x8x128xf32, #tpu.memory_space<vmem>>, vector<1x8x128xf32>
      %53 = vector.shape_cast %52 : vector<1x8x128xf32> to vector<8x128xf32>
      %54 = vector.shape_cast %51 : vector<8x128xf32> to vector<1x8x128xf32>
      tpu.vector_store %arg4[%c0_21, %c0_22, %c0_23], %54 {strides = array<i32>} : memref<1x8x128xf32, #tpu.memory_space<vmem>>, vector<1x8x128xf32>,
    } else {
    }
    return
  }
  func.func @transform_0(%arg0: i32, %arg1: i32) -> (i32, i32) {
    %c1_i32 = arith.constant 1 : i32
    %0 = arith.muli %arg0, %c1_i32 : i32
    %1 = arith.addi %0, %arg1 : i32
    %c0_i32 = arith.constant 0 : i32
    %2 = arith.minsi %1, %c0_i32 : i32
    %c0_i32_0 = arith.constant 0 : i32
    %c0_i32_1 = arith.constant 0 : i32
    return %2, %c0_i32_0 : i32, i32
  }
  func.func @transform_1(%arg0: i32, %arg1: i32) -> (i32, i32) {
    %c1_i32 = arith.constant 1 : i32
    %0 = arith.muli %arg0, %c1_i32 : i32
    %1 = arith.addi %0, %arg1 : i32
    %c0_i32 = arith.constant 0 : i32
    %2 = arith.minsi %1, %c0_i32 : i32
    %c0_i32_0 = arith.constant 0 : i32
    %c0_i32_1 = arith.constant 0 : i32
    return %2, %c0_i32_0 : i32, i32
  }
  func.func @transform_2(%arg0: i32, %arg1: i32) -> (i32, i32, i32) {
    %c0_i32 = arith.constant 0 : i32
    %c0_i32_0 = arith.constant 0 : i32
    %c0_i32_1 = arith.constant 0 : i32
    return %arg0, %c0_i32, %c0_i32_0 : i32, i32, i32
  }
}

</mosaic_0001>

<llo_original>
// kernel: tpu_custom_call.1
$region0: #{tpu_custom_call.1}
  #allocation0 [shape = 'u32[]', space=smem, size = 0x4, offset = 0x4, fixed_abs, tag = 'smem constant byte address 0x4 - core index']
  #allocation1 [shape = 'u32[144,128]{1,0:T(1,128)}', space=vmem, size = 0x12000, scoped, tag = 'internal scratch']
  #allocation2 [shape = 'f32[8,128]{1,0:T(8,128)}', space=vmem, size = 0x1000, scoped, tag = 'scratch operand']
  %s0 = inlined_call_operand.hbm [shape: f32[16,128], index: 0, kind: input, shape index: {}]
  %s1 = inlined_call_operand.hbm [shape: f32[16,128], index: 1, kind: input, shape index: {}]
  %s2 = inlined_call_operand.hbm [shape: f32[1,8,128], index: 2, kind: output, shape index: {}]
  %s3 = sld [smem:[#allocation0]]
  $region34: #{tpu_custom_call.1} parent=0
    _
  %s5 = ssub.s32 1, %s3
  %s6 = scalar_select 0, %s5, %s3
  $region1: #{tpu_custom_call.1} parent=0
    #allocation3 [shape = 'u8[8192]{0}', space=vmem, size = 0x2000, scoped, tag = 'input window, operand 0, single buffered']
    #allocation4 [shape = 's32[1]{0}', space=sflag, size = 0x4, scoped, tag = 'scoped memory for tpu_custom_call.1']
    #allocation5 [shape = 's32[1]{0}', space=sflag, size = 0x4, scoped, tag = 'scoped memory for tpu_custom_call.1']
    #allocation6 [shape = 'u8[8192]{0}', space=vmem, size = 0x2000, scoped, tag = 'input window, operand 1, single buffered']
    #allocation7 [shape = 's32[1]{0}', space=sflag, size = 0x4, scoped, tag = 'scoped memory for tpu_custom_call.1']
    #allocation8 [shape = 'u8[4096]{0}', space=vmem, size = 0x1000, scoped, tag = 'output window, operand 0, single buffered']
    %7 = vsyncpa [#allocation4], 0
    %8 = vsyncpa [#allocation7], 0
    %9 = vsyncpa [#allocation5], 0
    // Predicated region
    $region2: #{tpu_custom_call.1} parent=1 // pred_check
      _
    $region3: #{tpu_custom_call.1} parent=1 // pred_check_branch
      %11 = sbr.rel (0) target = $region5
    $region4: #{tpu_custom_call.1} parent=1 // pred_region
      %s12 = sadd.s32 0, 0
      %p13 = scmp.lt.s32.totalorder %s12, 0
      %s14 = scalar_select %p13, %s12, 0
      %s15 = smul.u32 2, %s14
      %s17 = ssub.s32 256, 256
      %18 = vsyncadd [#allocation4], %s17
      %s19 = smul.addr %s15, 128
      %s20 = scalar_lea.hbm %s0, %s19
      %s21 = sshll.u32 [#allocation3], 4
      %s22 = int_to_ptr.vmem [resolvable:$true] %s21
      %27 = dma.hbm_to_vmem [thread:$0]  %s20, 256, %s22, [#allocation4], 128, 128, 8
    $region5: #{tpu_custom_call.1} parent=1 // pred_fallthru
      _
    // Predicated region
    $region6: #{tpu_custom_call.1} parent=1 // pred_check
      _
    $region7: #{tpu_custom_call.1} parent=1 // pred_check_branch
      %29 = sbr.rel (0) target = $region9
    $region8: #{tpu_custom_call.1} parent=1 // pred_region
      %s30 = sadd.s32 0, 0
      %p31 = scmp.lt.s32.totalorder %s30, 0
      %s32 = scalar_select %p31, %s30, 0
      %s33 = smul.u32 2, %s32
      %s35 = ssub.s32 256, 256
      %36 = vsyncadd [#allocation7], %s35
      %s37 = smul.addr %s33, 128
      %s38 = scalar_lea.hbm %s1, %s37
      %s39 = sshll.u32 [#allocation6], 4
      %s40 = int_to_ptr.vmem [resolvable:$true] %s39
      %45 = dma.hbm_to_vmem [thread:$0]  %s38, 256, %s40, [#allocation7], 128, 128, 8
    $region9: #{tpu_custom_call.1} parent=1 // pred_fallthru
      _
    // Predicated region
    $region10: #{tpu_custom_call.1} parent=1 // pred_check
      _
    $region11: #{tpu_custom_call.1} parent=1 // pred_check_branch
      %47 = sbr.rel (0) target = $region13
    $region12: #{tpu_custom_call.1} parent=1 // pred_region
      %48 = dma.done [#allocation4], 256
    $region13: #{tpu_custom_call.1} parent=1 // pred_fallthru
      _
    // Predicated region
    $region14: #{tpu_custom_call.1} parent=1 // pred_check
      _
    $region15: #{tpu_custom_call.1} parent=1 // pred_check_branch
      %50 = sbr.rel (0) target = $region17
    $region16: #{tpu_custom_call.1} parent=1 // pred_region
      %51 = dma.done [#allocation7], 256
    $region17: #{tpu_custom_call.1} parent=1 // pred_fallthru
      _
    %s52 = sadd.s32 0, 0
    %p53 = scmp.lt.s32.totalorder %s52, 0
    %s54 = scalar_select %p53, %s52, 0
    %s55 = smul.u32 2, %s54
    %s56 = sadd.s32 0, 0
    %p57 = scmp.lt.s32.totalorder %s56, 0
    %s58 = scalar_select %p57, %s56, 0
    %s59 = smul.u32 2, %s58
    %p60 = scmp.eq.s32.totalorder 0, 0
    // Predicated region
    $region18: #{tpu_custom_call.1} parent=1 // pred_check
      %p61 = pneg %p60
    $region19: #{tpu_custom_call.1} parent=1 // pred_check_branch
      %63 = sbr.rel (%p61) target = $region21
    $region20: #{tpu_custom_call.1} parent=1 // pred_region
      %64 = vst [vmem:[#allocation2] sm:$0xff] 0.0
    $region21: #{tpu_custom_call.1} parent=1 // pred_fallthru
      _
    %v65 = vld [vmem:[#allocation3] sm:$0xff]
    %v66 = vld [vmem:[#allocation3 + $0x8] sm:$0xff]
    %v67 = vld [vmem:[#allocation6] sm:$0xff]
    %v68 = vld [vmem:[#allocation6 + $0x8] sm:$0xff]
    %v69 = vand.u32 2147483647, %v65
    %v70 = vand.u32 2147483647, %v66
    %v71 = vsub.f32 0.0, %v69
    %v72 = vsub.f32 0.0, %v70
    %v73 = vmul.f32 %v71, 1.442695
    %v74 = vpow.pop %v73
    %v75 = vmul.f32 %v72, 1.442695
    %v76 = vpow.pop %v75
    %v77 = vmax.f32 %v65, 0.0
    %v78 = vmax.f32 %v66, 0.0
    %v79 = vmul.f32 %v65, %v67
    %v80 = vmul.f32 %v66, %v68
    %v81 = vsub.f32 %v77, %v79
    %v82 = vsub.f32 %v78, %v80
    %v83 = vadd.f32 %v74, 1.0
    %v84 = vlog2.pop %v83
    %v85 = vmul.f32 %v84, 0.6931472
    %v86 = vmul.f32 -0.5, %v74
    %v87 = vadd.f32 %v86, 1.0
    %v88 = vmul.f32 %v87, %v74
    %v89 = vand.u32 2147483647, %v74
    %vm90 = vcmp.lt.f32.partialorder %v89, 0.0004427343
    %v91 = vsel %vm90, %v88, %v85
    %v92 = vadd.f32 %v76, 1.0
    %v93 = vlog2.pop %v92
    %v94 = vmul.f32 %v93, 0.6931472
    %v95 = vmul.f32 -0.5, %v76
    %v96 = vadd.f32 %v95, 1.0
    %v97 = vmul.f32 %v96, %v76
    %v98 = vand.u32 2147483647, %v76
    %vm99 = vcmp.lt.f32.partialorder %v98, 0.0004427343
    %v100 = vsel %vm99, %v97, %v94
    %v101 = vadd.f32 %v81, %v91
    %v102 = vadd.f32 %v82, %v100
    %v103 = vadd.f32 %v74, 1.0
    %v104 = vadd.f32 %v76, 1.0
    %v105 = vrcp.pop %v103
    %v106 = vrcp.pop %v104
    %v107 = vmul.f32 %v103, %v105
    %v108 = vmul.f32 %v104, %v106
    %v109 = vsub.f32 2.0, %v107
    %v110 = vsub.f32 2.0, %v108
    %v111 = vmul.f32 %v105, %v109
    %v112 = vmul.f32 %v106, %v110
    %v113 = vmul.f32 %v103, %v111
    %v114 = vmul.f32 %v104, %v112
    %v115 = vsub.f32 2.0, %v113
    %v116 = vsub.f32 2.0, %v114
    %v117 = vmul.f32 %v111, %v115
    %v118 = vmul.f32 %v112, %v116
    %vm119 = vcmp.ge.f32.partialorder %v65, 0.0
    %vm120 = vcmp.ge.f32.partialorder %v66, 0.0
    %v121 = vmul.f32 %v74, %v117
    %v122 = vmul.f32 %v76, %v118
    %v123 = vsel %vm119, %v117, %v121
    %v124 = vsel %vm120, %v118, %v122
    %v125 = vadd.f32 %v67, %v123
    %v126 = vadd.f32 %v68, %v124
    %v127 = vmul.f32 %v67, 2.0
    %v128 = vmul.f32 %v68, 2.0
    %v129 = vmul.f32 %v127, %v123
    %v130 = vmul.f32 %v128, %v124
    %v131 = vsub.f32 %v125, %v129
    %v132 = vsub.f32 %v126, %v130
    %v133 = vmul.f32 %v67, -0.5
    %v134 = vmul.f32 %v68, -0.5
    %v135 = vadd.f32 %v133, 0.75
    %v136 = vadd.f32 %v134, 0.75
    %v137 = vrsqrt.pop %v131
    %v138 = vmul.f32 %v131, %v137
    %vm139 = vcmp.eq.f32.partialorder %v131, inf
    %v140 = vsel %vm139, %v131, %v138
    %vm141 = vcmp.eq.f32.partialorder %v131, 0.0
    %v142 = vand.u32 %v131, 2147483648
    %v143 = vsel %vm141, %v142, %v140
    %v144 = vrsqrt.pop %v132
    %v145 = vmul.f32 %v132, %v144
    %vm146 = vcmp.eq.f32.partialorder %v132, inf
    %v147 = vsel %vm146, %v132, %v145
    %vm148 = vcmp.eq.f32.partialorder %v132, 0.0
    %v149 = vand.u32 %v132, 2147483648
    %v150 = vsel %vm148, %v149, %v147
    %v151 = vmul.f32 %v131, %v143
    %v152 = vmul.f32 %v132, %v150
    %v153 = vmul.f32 %v101, %v135
    %v154 = vmul.f32 %v102, %v136
    %v155 = vmul.f32 %v153, %v151
    %v156 = vmul.f32 %v154, %v152
    %v157 = vld [vmem:[#allocation2] sm:$0xff]
    %v158 = vadd.f32 %v155, %v156
    %v159 = vadd.f32 %v157, %v158
    %160 = vst [vmem:[#allocation2] sm:$0xff] %v159
    // Predicated region
    $region22: #{tpu_custom_call.1} parent=1 // pred_check
      %p161 = pneg %p60
    $region23: #{tpu_custom_call.1} parent=1 // pred_check_branch
      %163 = sbr.rel (%p161) target = $region25
    $region24: #{tpu_custom_call.1} parent=1 // pred_region
      %v164 = vld [vmem:[#allocation2] sm:$0xff]
      %165 = vst [vmem:[#allocation8] sm:$0xff] %v164
    $region25: #{tpu_custom_call.1} parent=1 // pred_fallthru
      _
    // Predicated region
    $region26: #{tpu_custom_call.1} parent=1 // pred_check
      _
    $region27: #{tpu_custom_call.1} parent=1 // pred_check_branch
      %167 = sbr.rel (0) target = $region29
    $region28: #{tpu_custom_call.1} parent=1 // pred_region
      %s169 = ssub.s32 128, 128
      %170 = vsyncadd [#allocation5], %s169
      %s172 = sshll.u32 [#allocation8], 4
      %s173 = int_to_ptr.vmem [resolvable:$true] %s172
      %175 = dma.vmem_to_hbm [thread:$0]  %s173, 128, %s2, [#allocation5]
    $region29: #{tpu_custom_call.1} parent=1 // pred_fallthru
      _
    // Predicated region
    $region30: #{tpu_custom_call.1} parent=1 // pred_check
      _
    $region31: #{tpu_custom_call.1} parent=1 // pred_check_branch
      %177 = sbr.rel (0) target = $region33
    $region32: #{tpu_custom_call.1} parent=1 // pred_region
      %178 = dma.done [#allocation5], 128
    $region33: #{tpu_custom_call.1} parent=1 // pred_fallthru
      _
    %179 = vsyncpa [#allocation4], 1
    %180 = vsyncpa [#allocation7], 1
    %181 = vsyncpa [#allocation5], 1

</llo_original>
